<compile_context>
chip_gen: v7x
topology: tpu7x:2x2x1
jax: 0.10.0
libtpu: 0.0.40
codegen_flags: <defaults>
</compile_context>

<pallas_src>
import jax
import jax.numpy as jnp
from jax.experimental import pallas as pl
from jax.experimental.pallas import tpu as pltpu

ALPHA = 0.3
BETA = 0.7
EPS = 1e-5

LANES = 128
SUBLANES = 8
MAX_TILE_ROWS = 8192                 # 8192 x 128 f32 = 4 MiB per input buffer
VMEM_LIMIT_BYTES = 40 * 1024 * 1024  # room for 16 MiB of pipelined buffers


def _largest_divisor(n, candidates):
    for c in candidates:
        if n % c == 0:
            return c
    return None


def _make_kernel(tile_rows, block_rows, sub_rows, valid_rows, tiles_per_core):
    n_blocks = tile_rows // block_rows
    n_sub = block_rows // sub_rows
    grp = sub_rows // SUBLANES

    def kernel(x_ref, t_ref, out_ref):
        c = pl.program_id(0)   # "core" (parallel) axis
        i = pl.program_id(1)   # reduction (arbitrary) axis

        @pl.when(i == 0)
        def _():
            out_ref[...] = jnp.zeros_like(out_ref)

        row0 = (c * tiles_per_core + i) * tile_rows
        full = row0 + tile_rows <= valid_rows

        def accumulate(masked):
            def step(b, carry):
                acc_xt, acc_x, acc_t = carry
                blk = pl.multiple_of(b * block_rows, block_rows)
                for s in range(n_sub):
                    r = blk + s * sub_rows
                    x = x_ref[pl.ds(r, sub_rows), :].astype(jnp.float32)
                    t = t_ref[pl.ds(r, sub_rows), :].astype(jnp.float32)
                    if masked:
                        rid = jax.lax.broadcasted_iota(
                            jnp.int32, (sub_rows, LANES), 0)
                        keep = (rid + (row0 + r)) < valid_rows
                        # Zero BOTH operands before the multiply so stale /
                        # OOB VMEM contents (incl. NaN/inf) never accumulate.
                        x = jnp.where(keep, x, 0.0)
                        t = jnp.where(keep, t, 0.0)
                    if grp > 1:
                        acc_xt = acc_xt + jnp.sum(
                            (x * t).reshape(grp, SUBLANES, LANES), axis=0)
                        acc_x = acc_x + jnp.sum(
                            x.reshape(grp, SUBLANES, LANES), axis=0)
                        acc_t = acc_t + jnp.sum(
                            t.reshape(grp, SUBLANES, LANES), axis=0)
                    else:
                        acc_xt = acc_xt + x * t
                        acc_x = acc_x + x
                        acc_t = acc_t + t
                return acc_xt, acc_x, acc_t

            zeros = jnp.zeros((SUBLANES, LANES), jnp.float32)
            acc_xt, acc_x, acc_t = jax.lax.fori_loop(
                0, n_blocks, step, (zeros, zeros, zeros))
            out_ref[0] += acc_xt
            out_ref[1] += acc_x
            out_ref[2] += acc_t

        # Hot path: fully in-bounds tile, no masking work.
        @pl.when(full)
        def _():
            accumulate(False)

        # Cold path: the single partial boundary tile (if any).
        @pl.when(jnp.logical_not(full))
        def _():
            accumulate(True)

    return kernel


def tversky_loss_pallas(inputs, true, alpha=ALPHA, beta=BETA, eps=EPS,
                        max_tile_rows=MAX_TILE_ROWS):
    """Matches TverskyLoss().forward(inputs, true) from the PyTorch module."""
    x = inputs.reshape(-1)
    t = true.reshape(-1)
    n = x.shape[0]

    chunk = SUBLANES * LANES                 # 1024
    n_aligned = (n // chunk) * chunk

    sums = jnp.zeros((3,), jnp.float32)      # [sum(x*t), sum(x), sum(t)]

    if n_aligned > 0:
        xk = x if n_aligned == n else x[:n_aligned]
        tk = t if n_aligned == n else t[:n_aligned]
        rows = n_aligned // LANES            # multiple of 8
        x2 = xk.reshape(rows, LANES)
        t2 = tk.reshape(rows, LANES)

        tile_rows = max(SUBLANES, (min(max_tile_rows, rows) // SUBLANES) * SUBLANES)
        num_tiles = pl.cdiv(rows, tile_rows)
        # Only split across a leading "core" axis when it is waste-free.
        num_cores = 2 if (num_tiles >= 2 and num_tiles % 2 == 0) else 1
        tiles_per_core = num_tiles // num_cores

        sub_rows = _largest_divisor(tile_rows, (64, 32, 16, SUBLANES))
        block_rows = _largest_divisor(
            tile_rows, (4 * sub_rows, 2 * sub_rows, sub_rows))

        kernel = _make_kernel(tile_rows, block_rows, sub_rows, rows,
                              tiles_per_core)

        def in_map(c, i):
            return (c * tiles_per_core + i, 0)

        partials = pl.pallas_call(
            kernel,
            out_shape=jax.ShapeDtypeStruct((num_cores, 3, SUBLANES, LANES),
                                           jnp.float32),
            grid_spec=pl.GridSpec(
                grid=(num_cores, tiles_per_core),
                in_specs=[
                    pl.BlockSpec((tile_rows, LANES), in_map),
                    pl.BlockSpec((tile_rows, LANES), in_map),
                ],
                out_specs=pl.BlockSpec((None, 3, SUBLANES, LANES),
                                       lambda c, i: (c, 0, 0, 0)),
            ),
            compiler_params=pltpu.CompilerParams(
                dimension_semantics=("parallel", "arbitrary"),
                vmem_limit_bytes=VMEM_LIMIT_BYTES),
        )(x2, t2)

        sums = sums + jnp.sum(partials, axis=(0, 2, 3))

    if n_aligned != n:
        # Tiny (<1024 element) tail handled directly in JAX; avoids padding /
        # copying the whole tensor.
        xt_f = x[n_aligned:].astype(jnp.float32)
        tt_f = t[n_aligned:].astype(jnp.float32)
        sums = sums + jnp.stack(
            [jnp.sum(xt_f * tt_f), jnp.sum(xt_f), jnp.sum(tt_f)])

    tp = sums[0]
    fn = sums[1] - tp                        # sum(inputs * (1 - true))
    fp = sums[2] - tp                        # sum((1 - inputs) * true)
    score = (tp + eps) / (tp + alpha * fn + beta * fp + eps)
    return 1.0 - score


def _tversky_loss_ref(inputs, true, alpha=ALPHA, beta=BETA, eps=EPS):
    x = inputs.reshape(-1).astype(jnp.float32)
    t = true.reshape(-1).astype(jnp.float32)
    tp = jnp.sum(x * t)
    fn = jnp.sum(x * (1.0 - t))
    fp = jnp.sum((1.0 - x) * t)
    score = (tp + eps) / (tp + alpha * fn + beta * fp + eps)
    return 1.0 - score


if __name__ == "__main__":
    key = jax.random.PRNGKey(0)
    k1, k2, k3, k4, k5, k6 = jax.random.split(key, 6)

    loss_fn = jax.jit(lambda a, b: tversky_loss_pallas(a, b))
    # Small tile size to exercise multi-tile accumulation, the partial
    # boundary-tile mask, and the 2-way core split, on tiny inputs.
    loss_fn_small_tiles = jax.jit(
        lambda a, b: tversky_loss_pallas(a, b, max_tile_rows=64))

    # 1) Small NCHW case, like the PyTorch module would receive (n % 1024 == 0).
    shape = (2, 4, 16, 16)
    inputs = jax.nn.sigmoid(jax.random.normal(k1, shape, dtype=jnp.float32))
    true = (jax.random.uniform(k2, shape) > 0.5).astype(jnp.float32)
    loss = jax.block_until_ready(loss_fn(inputs, true))
    ref = _tversky_loss_ref(inputs, true)
    assert jnp.allclose(loss, ref, atol=1e-5, rtol=1e-4), (loss, ref)

    # 2) Multi-tile + masked partial boundary tile + 2-core split.
    shape2 = (3, 3, 32, 32)   # 9216 elems -> 72 rows -> 2 tiles of 64 rows
    inputs2 = jax.nn.sigmoid(jax.random.normal(k3, shape2, dtype=jnp.float32))
    true2 = (jax.random.uniform(k4, shape2) > 0.5).astype(jnp.float32)
    loss2 = jax.block_until_ready(loss_fn_small_tiles(inputs2, true2))
    ref2 = _tversky_loss_ref(inputs2, true2)
    assert jnp.allclose(loss2, ref2, atol=1e-5, rtol=1e-4), (loss2, ref2)

    # 3) Non-1024-aligned element count: kernel on the aligned prefix, tiny
    #    JAX reduction on the tail (no whole-array pad).
    shape3 = (2, 5, 13, 17)   # 2210 elems -> 2048 through kernel + 162 tail
    inputs3 = jax.nn.sigmoid(jax.random.normal(k5, shape3, dtype=jnp.float32))
    true3 = (jax.random.uniform(k6, shape3) > 0.5).astype(jnp.float32)
    loss3 = jax.block_until_ready(loss_fn(inputs3, true3))
    ref3 = _tversky_loss_ref(inputs3, true3)
    assert jnp.allclose(loss3, ref3, atol=1e-5, rtol=1e-4), (loss3, ref3)

    print("KERNEL_OK")
</pallas_src>

<mosaic_0001>
module attributes {stable_mosaic.version = 11 : i64} {
  func.func @kernel(%arg0: i32, %arg1: i32, %arg2: memref<16x128xf32, #tpu.memory_space<vmem>>, %arg3: memref<16x128xf32, #tpu.memory_space<vmem>>, %arg4: memref<1x3x8x128xf32, #tpu.memory_space<vmem>>) attributes {dimension_semantics = [#tpu.dimension_semantics<parallel>, #tpu.dimension_semantics<arbitrary>], iteration_bounds = array<i64: 1, 1>, scalar_prefetch = 0 : i64, scratch_operands = 0 : i64, tpu.core_type = #tpu.core_type<tc>, window_params = [{transform_indices = @transform_0, window_bounds = array<i64: 16, 128>}, {transform_indices = @transform_1, window_bounds = array<i64: 16, 128>}, {transform_indices = @transform_2, window_bounds = array<i64: 1, 3, 8, 128>}]} {
    %c0_i32 = arith.constant 0 : i32
    %0 = arith.cmpi eq, %arg1, %c0_i32 : i32
    %1 = arith.extui %0 : i1 to i32
    %c0_i32_0 = arith.constant 0 : i32
    %2 = arith.cmpi ne, %1, %c0_i32_0 : i32
    scf.if %2 {
      %cst = arith.constant 0.000000e+00 : f32
      %13 = vector.broadcast %cst : f32 to vector<3x8x128xf32>
      %c0 = arith.constant 0 : index
      %c0_5 = arith.constant 0 : index
      %c0_6 = arith.constant 0 : index
      %c0_7 = arith.constant 0 : index
      %14 = vector.load %arg4[%c0, %c0_5, %c0_6, %c0_7] : memref<1x3x8x128xf32, #tpu.memory_space<vmem>>, vector<1x3x8x128xf32>
      %15 = vector.shape_cast %14 : vector<1x3x8x128xf32> to vector<3x8x128xf32>
      %16 = vector.shape_cast %13 : vector<3x8x128xf32> to vector<1x3x8x128xf32>
      tpu.vector_store %arg4[%c0, %c0_5, %c0_6, %c0_7], %16 {strides = array<i32>} : memref<1x3x8x128xf32, #tpu.memory_space<vmem>>, vector<1x3x8x128xf32>,
    } else {
    }
    %c1_i32 = arith.constant 1 : i32
    %3 = arith.muli %arg0, %c1_i32 : i32
    %4 = arith.addi %3, %arg1 : i32
    %c16_i32 = arith.constant 16 : i32
    %5 = arith.muli %4, %c16_i32 : i32
    %c16_i32_1 = arith.constant 16 : i32
    %6 = arith.addi %5, %c16_i32_1 : i32
    %c16_i32_2 = arith.constant 16 : i32
    %7 = arith.cmpi sle, %6, %c16_i32_2 : i32
    %8 = arith.extui %7 : i1 to i32
    %c0_i32_3 = arith.constant 0 : i32
    %9 = arith.cmpi ne, %8, %c0_i32_3 : i32
    scf.if %9 {
      %cst = arith.constant 0.000000e+00 : f32
      %13 = vector.broadcast %cst : f32 to vector<8x128xf32>
      %c0_i32_5 = arith.constant 0 : i32
      %c16_i32_6 = arith.constant 16 : i32
      %14 = arith.muli %c0_i32_5, %c16_i32_6 : i32
      %15 = tpu.assume_multiple %14, 16 : i32
      %c0_i32_7 = arith.constant 0 : i32
      %16 = arith.addi %15, %c0_i32_7 : i32
      %17 = arith.index_cast %16 : i32 to index
      %c0 = arith.constant 0 : index
      %18 = vector.load %arg2[%17, %c0] : memref<16x128xf32, #tpu.memory_space<vmem>>, vector<16x128xf32>
      %19 = arith.index_cast %16 : i32 to index
      %c0_8 = arith.constant 0 : index
      %20 = vector.load %arg3[%19, %c0_8] : memref<16x128xf32, #tpu.memory_space<vmem>>, vector<16x128xf32>
      %21 = arith.mulf %18, %20 : vector<16x128xf32>
      %22 = vector.shape_cast %21 : vector<16x128xf32> to vector<2x8x128xf32>
      %cst_9 = arith.constant dense<0.000000e+00> : vector<8x128xf32>
      %23 = vector.multi_reduction <add>, %22, %cst_9 [0] : vector<2x8x128xf32> to vector<8x128xf32>
      %24 = arith.addf %13, %23 : vector<8x128xf32>
      %25 = vector.shape_cast %18 : vector<16x128xf32> to vector<2x8x128xf32>
      %cst_10 = arith.constant dense<0.000000e+00> : vector<8x128xf32>
      %26 = vector.multi_reduction <add>, %25, %cst_10 [0] : vector<2x8x128xf32> to vector<8x128xf32>
      %27 = arith.addf %13, %26 : vector<8x128xf32>
      %28 = vector.shape_cast %20 : vector<16x128xf32> to vector<2x8x128xf32>
      %cst_11 = arith.constant dense<0.000000e+00> : vector<8x128xf32>
      %29 = vector.multi_reduction <add>, %28, %cst_11 [0] : vector<2x8x128xf32> to vector<8x128xf32>
      %30 = arith.addf %13, %29 : vector<8x128xf32>
      %c1_i32_12 = arith.constant 1 : i32
      %c0_13 = arith.constant 0 : index
      %c0_14 = arith.constant 0 : index
      %c0_15 = arith.constant 0 : index
      %c0_16 = arith.constant 0 : index
      %31 = vector.load %arg4[%c0_13, %c0_14, %c0_15, %c0_16] : memref<1x3x8x128xf32, #tpu.memory_space<vmem>>, vector<1x1x8x128xf32>
      %32 = vector.shape_cast %31 : vector<1x1x8x128xf32> to vector<8x128xf32>
      %33 = arith.addf %32, %24 : vector<8x128xf32>
      %c0_17 = arith.constant 0 : index
      %c0_18 = arith.constant 0 : index
      %c0_19 = arith.constant 0 : index
      %c0_20 = arith.constant 0 : index
      %34 = vector.load %arg4[%c0_17, %c0_18, %c0_19, %c0_20] : memref<1x3x8x128xf32, #tpu.memory_space<vmem>>, vector<1x1x8x128xf32>
      %35 = vector.shape_cast %34 : vector<1x1x8x128xf32> to vector<8x128xf32>
      %36 = vector.shape_cast %33 : vector<8x128xf32> to vector<1x1x8x128xf32>
      tpu.vector_store %arg4[%c0_17, %c0_18, %c0_19, %c0_20], %36 {strides = array<i32>} : memref<1x3x8x128xf32, #tpu.memory_space<vmem>>, vector<1x1x8x128xf32>,
      %c0_21 = arith.constant 0 : index
      %c1 = arith.constant 1 : index
      %c0_22 = arith.constant 0 : index
      %c0_23 = arith.constant 0 : index
      %37 = vector.load %arg4[%c0_21, %c1, %c0_22, %c0_23] : memref<1x3x8x128xf32, #tpu.memory_space<vmem>>, vector<1x1x8x128xf32>
      %38 = vector.shape_cast %37 : vector<1x1x8x128xf32> to vector<8x128xf32>
      %39 = arith.addf %38, %27 : vector<8x128xf32>
      %c0_24 = arith.constant 0 : index
      %c1_25 = arith.constant 1 : index
      %c0_26 = arith.constant 0 : index
      %c0_27 = arith.constant 0 : index
      %40 = vector.load %arg4[%c0_24, %c1_25, %c0_26, %c0_27] : memref<1x3x8x128xf32, #tpu.memory_space<vmem>>, vector<1x1x8x128xf32>
      %41 = vector.shape_cast %40 : vector<1x1x8x128xf32> to vector<8x128xf32>
      %42 = vector.shape_cast %39 : vector<8x128xf32> to vector<1x1x8x128xf32>
      tpu.vector_store %arg4[%c0_24, %c1_25, %c0_26, %c0_27], %42 {strides = array<i32>} : memref<1x3x8x128xf32, #tpu.memory_space<vmem>>, vector<1x1x8x128xf32>,
      %c0_28 = arith.constant 0 : index
      %c2 = arith.constant 2 : index
      %c0_29 = arith.constant 0 : index
      %c0_30 = arith.constant 0 : index
      %43 = vector.load %arg4[%c0_28, %c2, %c0_29, %c0_30] : memref<1x3x8x128xf32, #tpu.memory_space<vmem>>, vector<1x1x8x128xf32>
      %44 = vector.shape_cast %43 : vector<1x1x8x128xf32> to vector<8x128xf32>
      %45 = arith.addf %44, %30 : vector<8x128xf32>
      %c0_31 = arith.constant 0 : index
      %c2_32 = arith.constant 2 : index
      %c0_33 = arith.constant 0 : index
      %c0_34 = arith.constant 0 : index
      %46 = vector.load %arg4[%c0_31, %c2_32, %c0_33, %c0_34] : memref<1x3x8x128xf32, #tpu.memory_space<vmem>>, vector<1x1x8x128xf32>
      %47 = vector.shape_cast %46 : vector<1x1x8x128xf32> to vector<8x128xf32>
      %48 = vector.shape_cast %45 : vector<8x128xf32> to vector<1x1x8x128xf32>
      tpu.vector_store %arg4[%c0_31, %c2_32, %c0_33, %c0_34], %48 {strides = array<i32>} : memref<1x3x8x128xf32, #tpu.memory_space<vmem>>, vector<1x1x8x128xf32>,
    } else {
    }
    %true = arith.constant true
    %10 = arith.xori %7, %true : i1
    %11 = arith.extui %10 : i1 to i32
    %c0_i32_4 = arith.constant 0 : i32
    %12 = arith.cmpi ne, %11, %c0_i32_4 : i32
    scf.if %12 {
      %cst = arith.constant 0.000000e+00 : f32
      %13 = vector.broadcast %cst : f32 to vector<8x128xf32>
      %c0_i32_5 = arith.constant 0 : i32
      %c16_i32_6 = arith.constant 16 : i32
      %14 = arith.muli %c0_i32_5, %c16_i32_6 : i32
      %15 = tpu.assume_multiple %14, 16 : i32
      %c0_i32_7 = arith.constant 0 : i32
      %16 = arith.addi %15, %c0_i32_7 : i32
      %17 = arith.index_cast %16 : i32 to index
      %c0 = arith.constant 0 : index
      %18 = vector.load %arg2[%17, %c0] : memref<16x128xf32, #tpu.memory_space<vmem>>, vector<16x128xf32>
      %19 = arith.index_cast %16 : i32 to index
      %c0_8 = arith.constant 0 : index
      %20 = vector.load %arg3[%19, %c0_8] : memref<16x128xf32, #tpu.memory_space<vmem>>, vector<16x128xf32>
      %21 = tpu.iota {dimensions = array<i32: 0>} : vector<16x128xi32>
      %22 = arith.addi %5, %16 : i32
      %23 = vector.broadcast %22 : i32 to vector<16x128xi32>
      %24 = arith.addi %21, %23 : vector<16x128xi32>
      %c16_i32_9 = arith.constant 16 : i32
      %25 = vector.broadcast %c16_i32_9 : i32 to vector<16x128xi32>
      %26 = arith.cmpi slt, %24, %25 : vector<16x128xi32>
      %cst_10 = arith.constant 0.000000e+00 : f32
      %27 = vector.broadcast %cst_10 : f32 to vector<16x128xf32>
      %28 = arith.select %26, %18, %27 : vector<16x128xi1>, vector<16x128xf32>
      %cst_11 = arith.constant 0.000000e+00 : f32
      %29 = vector.broadcast %cst_11 : f32 to vector<16x128xf32>
      %30 = arith.select %26, %20, %29 : vector<16x128xi1>, vector<16x128xf32>
      %31 = arith.mulf %28, %30 : vector<16x128xf32>
      %32 = vector.shape_cast %31 : vector<16x128xf32> to vector<2x8x128xf32>
      %cst_12 = arith.constant dense<0.000000e+00> : vector<8x128xf32>
      %33 = vector.multi_reduction <add>, %32, %cst_12 [0] : vector<2x8x128xf32> to vector<8x128xf32>
      %34 = arith.addf %13, %33 : vector<8x128xf32>
      %35 = vector.shape_cast %28 : vector<16x128xf32> to vector<2x8x128xf32>
      %cst_13 = arith.constant dense<0.000000e+00> : vector<8x128xf32>
      %36 = vector.multi_reduction <add>, %35, %cst_13 [0] : vector<2x8x128xf32> to vector<8x128xf32>
      %37 = arith.addf %13, %36 : vector<8x128xf32>
      %38 = vector.shape_cast %30 : vector<16x128xf32> to vector<2x8x128xf32>
      %cst_14 = arith.constant dense<0.000000e+00> : vector<8x128xf32>
      %39 = vector.multi_reduction <add>, %38, %cst_14 [0] : vector<2x8x128xf32> to vector<8x128xf32>
      %40 = arith.addf %13, %39 : vector<8x128xf32>
      %c1_i32_15 = arith.constant 1 : i32
      %c0_16 = arith.constant 0 : index
      %c0_17 = arith.constant 0 : index
      %c0_18 = arith.constant 0 : index
      %c0_19 = arith.constant 0 : index
      %41 = vector.load %arg4[%c0_16, %c0_17, %c0_18, %c0_19] : memref<1x3x8x128xf32, #tpu.memory_space<vmem>>, vector<1x1x8x128xf32>
      %42 = vector.shape_cast %41 : vector<1x1x8x128xf32> to vector<8x128xf32>
      %43 = arith.addf %42, %34 : vector<8x128xf32>
      %c0_20 = arith.constant 0 : index
      %c0_21 = arith.constant 0 : index
      %c0_22 = arith.constant 0 : index
      %c0_23 = arith.constant 0 : index
      %44 = vector.load %arg4[%c0_20, %c0_21, %c0_22, %c0_23] : memref<1x3x8x128xf32, #tpu.memory_space<vmem>>, vector<1x1x8x128xf32>
      %45 = vector.shape_cast %44 : vector<1x1x8x128xf32> to vector<8x128xf32>
      %46 = vector.shape_cast %43 : vector<8x128xf32> to vector<1x1x8x128xf32>
      tpu.vector_store %arg4[%c0_20, %c0_21, %c0_22, %c0_23], %46 {strides = array<i32>} : memref<1x3x8x128xf32, #tpu.memory_space<vmem>>, vector<1x1x8x128xf32>,
      %c0_24 = arith.constant 0 : index
      %c1 = arith.constant 1 : index
      %c0_25 = arith.constant 0 : index
      %c0_26 = arith.constant 0 : index
      %47 = vector.load %arg4[%c0_24, %c1, %c0_25, %c0_26] : memref<1x3x8x128xf32, #tpu.memory_space<vmem>>, vector<1x1x8x128xf32>
      %48 = vector.shape_cast %47 : vector<1x1x8x128xf32> to vector<8x128xf32>
      %49 = arith.addf %48, %37 : vector<8x128xf32>
      %c0_27 = arith.constant 0 : index
      %c1_28 = arith.constant 1 : index
      %c0_29 = arith.constant 0 : index
      %c0_30 = arith.constant 0 : index
      %50 = vector.load %arg4[%c0_27, %c1_28, %c0_29, %c0_30] : memref<1x3x8x128xf32, #tpu.memory_space<vmem>>, vector<1x1x8x128xf32>
      %51 = vector.shape_cast %50 : vector<1x1x8x128xf32> to vector<8x128xf32>
      %52 = vector.shape_cast %49 : vector<8x128xf32> to vector<1x1x8x128xf32>
      tpu.vector_store %arg4[%c0_27, %c1_28, %c0_29, %c0_30], %52 {strides = array<i32>} : memref<1x3x8x128xf32, #tpu.memory_space<vmem>>, vector<1x1x8x128xf32>,
      %c0_31 = arith.constant 0 : index
      %c2 = arith.constant 2 : index
      %c0_32 = arith.constant 0 : index
      %c0_33 = arith.constant 0 : index
      %53 = vector.load %arg4[%c0_31, %c2, %c0_32, %c0_33] : memref<1x3x8x128xf32, #tpu.memory_space<vmem>>, vector<1x1x8x128xf32>
      %54 = vector.shape_cast %53 : vector<1x1x8x128xf32> to vector<8x128xf32>
      %55 = arith.addf %54, %40 : vector<8x128xf32>
      %c0_34 = arith.constant 0 : index
      %c2_35 = arith.constant 2 : index
      %c0_36 = arith.constant 0 : index
      %c0_37 = arith.constant 0 : index
      %56 = vector.load %arg4[%c0_34, %c2_35, %c0_36, %c0_37] : memref<1x3x8x128xf32, #tpu.memory_space<vmem>>, vector<1x1x8x128xf32>
      %57 = vector.shape_cast %56 : vector<1x1x8x128xf32> to vector<8x128xf32>
      %58 = vector.shape_cast %55 : vector<8x128xf32> to vector<1x1x8x128xf32>
      tpu.vector_store %arg4[%c0_34, %c2_35, %c0_36, %c0_37], %58 {strides = array<i32>} : memref<1x3x8x128xf32, #tpu.memory_space<vmem>>, vector<1x1x8x128xf32>,
    } else {
    }
    return
  }
  func.func @transform_0(%arg0: i32, %arg1: i32) -> (i32, i32) {
    %c1_i32 = arith.constant 1 : i32
    %0 = arith.muli %arg0, %c1_i32 : i32
    %1 = arith.addi %0, %arg1 : i32
    %c0_i32 = arith.constant 0 : i32
    %c0_i32_0 = arith.constant 0 : i32
    return %1, %c0_i32 : i32, i32
  }
  func.func @transform_1(%arg0: i32, %arg1: i32) -> (i32, i32) {
    %c1_i32 = arith.constant 1 : i32
    %0 = arith.muli %arg0, %c1_i32 : i32
    %1 = arith.addi %0, %arg1 : i32
    %c0_i32 = arith.constant 0 : i32
    %c0_i32_0 = arith.constant 0 : i32
    return %1, %c0_i32 : i32, i32
  }
  func.func @transform_2(%arg0: i32, %arg1: i32) -> (i32, i32, i32, i32) {
    %c0_i32 = arith.constant 0 : i32
    %c0_i32_0 = arith.constant 0 : i32
    %c0_i32_1 = arith.constant 0 : i32
    %c0_i32_2 = arith.constant 0 : i32
    return %arg0, %c0_i32, %c0_i32_0, %c0_i32_1 : i32, i32, i32, i32
  }
}

</mosaic_0001>

<llo_original>
// kernel: _lambda_.1
$region0: #{_lambda_.1}
  #allocation0 [shape = 'u32[]', space=smem, size = 0x4, offset = 0x4, fixed_abs, tag = 'smem constant byte address 0x4 - core index']
  #allocation1 [shape = 'u32[144,128]{1,0:T(1,128)}', space=vmem, size = 0x12000, scoped, tag = 'internal scratch']
  %s0 = inlined_call_operand.vmem [shape: f32[16,128], index: 0, kind: input, shape index: {}]
  %s1 = inlined_call_operand.vmem [shape: f32[16,128], index: 1, kind: input, shape index: {}]
  %s2 = inlined_call_operand.vmem [shape: f32[1,3,8,128], index: 2, kind: output, shape index: {}]
  %s3 = sld [smem:[#allocation0]]
  $region30: #{_lambda_.1} parent=0
    _
  %s5 = ssub.s32 1, %s3
  %s6 = scalar_select 0, %s5, %s3
  // Predicated region
  $region2: #{_lambda_.1} parent=0 // pred_check
    _
  $region3: #{_lambda_.1} parent=0 // pred_check_branch
    %8 = sbr.rel (0) target = $region5
  $region4: #{_lambda_.1} parent=0 // pred_region
    %s9 = sadd.s32 0, 0
    %s10 = smul.u32 2, %s9
    %p11 = scmp.lt.s32.totalorder %s10, 1
    %s12 = scalar_select %p11, %s10, 1
    %s13 = smul.addr %s12, 8
    %s14 = scalar_lea.vmem %s0, %s13
    %s15 = sadd.s32 0, 0
    %s16 = smul.u32 2, %s15
  $region5: #{_lambda_.1} parent=0 // pred_fallthru
    _
  // Predicated region
  $region6: #{_lambda_.1} parent=0 // pred_check
    _
  $region7: #{_lambda_.1} parent=0 // pred_check_branch
    %18 = sbr.rel (0) target = $region9
  $region8: #{_lambda_.1} parent=0 // pred_region
    %s19 = sadd.s32 0, 0
    %s20 = smul.u32 2, %s19
    %p21 = scmp.lt.s32.totalorder %s20, 1
    %s22 = scalar_select %p21, %s20, 1
    %s23 = smul.addr %s22, 8
    %s24 = scalar_lea.vmem %s1, %s23
    %s25 = sadd.s32 0, 0
    %s26 = smul.u32 2, %s25
  $region9: #{_lambda_.1} parent=0 // pred_fallthru
    _
  %s27 = sadd.s32 0, 0
  %s28 = smul.u32 2, %s27
  %p29 = scmp.lt.s32.totalorder %s28, 1
  %s30 = scalar_select %p29, %s28, 1
  %s31 = smul.addr %s30, 8
  %s32 = scalar_lea.vmem %s0, %s31
  %s33 = sadd.s32 0, 0
  %s34 = smul.u32 2, %s33
  %p35 = scmp.lt.s32.totalorder %s34, 1
  %s36 = scalar_select %p35, %s34, 1
  %s37 = smul.addr %s36, 8
  %s38 = scalar_lea.vmem %s1, %s37
  %s39 = sadd.s32 0, 0
  %s40 = smul.u32 2, %s39
  %p41 = scmp.lt.s32.totalorder %s40, 1
  %s42 = scalar_select %p41, %s40, 1
  %s43 = smul.addr %s42, 8
  %s44 = scalar_lea.vmem %s0, %s43
  %s45 = sadd.s32 0, 0
  %s46 = smul.u32 2, %s45
  %s47 = sadd.s32 0, 0
  %s48 = smul.u32 2, %s47
  %p49 = scmp.lt.s32.totalorder %s48, 1
  %s50 = scalar_select %p49, %s48, 1
  %s51 = smul.addr %s50, 8
  %s52 = scalar_lea.vmem %s1, %s51
  %s53 = sadd.s32 0, 0
  %s54 = smul.u32 2, %s53
  %p55 = scmp.eq.s32.totalorder 0, 0
  // Predicated region
  $region10: #{_lambda_.1} parent=0 // pred_check
    %p56 = pneg %p55
  $region11: #{_lambda_.1} parent=0 // pred_check_branch
    %58 = sbr.rel (%p56) target = $region13
  $region12: #{_lambda_.1} parent=0 // pred_region
    %59 = vst [vmem:[%s2] sm:$0xff] 0.0
    %60 = vst [vmem:[%s2 + $0x8] sm:$0xff] 0.0
    %61 = vst [vmem:[%s2 + $0x10] sm:$0xff] 0.0
  $region13: #{_lambda_.1} parent=0 // pred_fallthru
    _
  %s62 = sadd.s32 0, 0
  %s63 = smul.u32 %s62, 16
  %s64 = sadd.s32 %s63, 16
  %p65 = scmp.le.s32.totalorder %s64, 16
  // Predicated region
  $region14: #{_lambda_.1} parent=0 // pred_check
    %p66 = pneg %p65
  $region15: #{_lambda_.1} parent=0 // pred_check_branch
    %68 = sbr.rel (%p66) target = $region17
  $region16: #{_lambda_.1} parent=0 // pred_region
    %v69 = vld [vmem:[%s44] sm:$0xff]
    %v70 = vld [vmem:[%s44 + $0x8] sm:$0xff]
    %v71 = vld [vmem:[%s52] sm:$0xff]
    %v72 = vld [vmem:[%s52 + $0x8] sm:$0xff]
    %v73 = vmul.f32 %v69, %v71
    %v74 = vmul.f32 %v70, %v72
    %v75 = vadd.f32 %v73, %v74
    %v76 = vadd.f32 %v75, 0.0
    %v77 = vadd.f32 %v69, %v70
    %v78 = vadd.f32 %v77, 0.0
    %v79 = vadd.f32 %v71, %v72
    %v80 = vadd.f32 %v79, 0.0
    %v81 = vld [vmem:[%s2] sm:$0xff]
    %v82 = vadd.f32 %v81, %v76
    %83 = vst [vmem:[%s2] sm:$0xff] %v82
    %s84 = scalar_lea.vmem %s2, 8
    %v85 = vld [vmem:[%s84] sm:$0xff]
    %v86 = vadd.f32 %v85, %v78
    %87 = vst [vmem:[%s84] sm:$0xff] %v86
    %s88 = scalar_lea.vmem %s2, 16
    %v89 = vld [vmem:[%s88] sm:$0xff]
    %v90 = vadd.f32 %v89, %v80
    %91 = vst [vmem:[%s88] sm:$0xff] %v90
  $region17: #{_lambda_.1} parent=0 // pred_fallthru
    _
  %p92 = scmp.gt.s32.totalorder %s64, 16
  // Predicated region
  $region18: #{_lambda_.1} parent=0 // pred_check
    %p93 = pneg %p92
  $region19: #{_lambda_.1} parent=0 // pred_check_branch
    %95 = sbr.rel (%p93) target = $region21
  $region20: #{_lambda_.1} parent=0 // pred_region
    %v96 = vld [vmem:[%s44] sm:$0xff]
    %v97 = vld [vmem:[%s44 + $0x8] sm:$0xff]
    %v98 = vld [vmem:[%s52] sm:$0xff]
    %v99 = vld [vmem:[%s52 + $0x8] sm:$0xff]
    %v100 = vlaneseq
    %v101 = vshrl.u32 %v100, 7
    %v102 = vadd.s32 %v101, 8
    %s103 = sadd.s32 %s63, 0
    %v104 = vstv %s103
    %v105 = vadd.s32 %v101, %v104
    %v106 = vadd.s32 %v102, %v104
    %vm107 = vcmp.lt.s32.totalorder %v105, 16
    %vm108 = vcmp.lt.s32.totalorder %v106, 16
    %v109 = vsel %vm107, %v96, 0.0
    %v110 = vsel %vm108, %v97, 0.0
    %v111 = vsel %vm107, %v98, 0.0
    %v112 = vsel %vm108, %v99, 0.0
    %v113 = vmul.f32 %v109, %v111
    %v114 = vmul.f32 %v110, %v112
    %v115 = vadd.f32 %v113, %v114
    %v116 = vadd.f32 %v115, 0.0
    %v117 = vadd.f32 %v109, %v110
    %v118 = vadd.f32 %v117, 0.0
    %v119 = vadd.f32 %v111, %v112
    %v120 = vadd.f32 %v119, 0.0
    %v121 = vld [vmem:[%s2] sm:$0xff]
    %v122 = vadd.f32 %v121, %v116
    %123 = vst [vmem:[%s2] sm:$0xff] %v122
    %s124 = scalar_lea.vmem %s2, 8
    %v125 = vld [vmem:[%s124] sm:$0xff]
    %v126 = vadd.f32 %v125, %v118
    %127 = vst [vmem:[%s124] sm:$0xff] %v126
    %s128 = scalar_lea.vmem %s2, 16
    %v129 = vld [vmem:[%s128] sm:$0xff]
    %v130 = vadd.f32 %v129, %v120
    %131 = vst [vmem:[%s128] sm:$0xff] %v130
  $region21: #{_lambda_.1} parent=0 // pred_fallthru
    _
  // Predicated region
  $region22: #{_lambda_.1} parent=0 // pred_check
    _
  $region23: #{_lambda_.1} parent=0 // pred_check_branch
    %133 = sbr.rel (0) target = $region25
  $region24: #{_lambda_.1} parent=0 // pred_region
    _
  $region25: #{_lambda_.1} parent=0 // pred_fallthru
    _
  // Predicated region
  $region26: #{_lambda_.1} parent=0 // pred_check
    _
  $region27: #{_lambda_.1} parent=0 // pred_check_branch
    %135 = sbr.rel (0) target = $region29
  $region28: #{_lambda_.1} parent=0 // pred_region
    _
  $region29: #{_lambda_.1} parent=0 // pred_fallthru
    _

</llo_original>
